<compile_context>
chip_gen: v5e
topology: v5e:2x2
jax: 0.10.0
libtpu: 0.0.40
codegen_flags: <defaults>
</compile_context>

<pallas_src>
import functools

import jax
import jax.numpy as jnp
from jax.experimental import pallas as pl
from jax.experimental.pallas import tpu as pltpu


def _round_up(n, m):
    return ((n + m - 1) // m) * m


def layering_kernel(num_classes, x_ref, w1_ref, b1_ref, w2_ref, b2_ref,
                    rep_ref, scores_ref, lse_ref):
    x = x_ref[...]                                            # (TM, Fp)  bf16

    # ---- representor: Linear + ReLU (MXU matmul, f32 accumulate, VPU max) ----
    rep = jnp.dot(x, w1_ref[...],
                  preferred_element_type=jnp.float32) + b1_ref[...]
    rep = jnp.maximum(rep, 0.0)                               # (TM, Hp)  f32
    rep_bf = rep.astype(jnp.bfloat16)
    rep_ref[...] = rep_bf                                     # bf16 writeback

    # ---- predictor: Linear (bf16 inputs, f32 accumulate) ----
    logits = jnp.dot(rep_bf, w2_ref[...],
                     preferred_element_type=jnp.float32) + b2_ref[...]   # (TM, Cp) f32

    # ---- log_softmax over the class axis ----
    cp = logits.shape[1]
    if num_classes == cp:
        # No class padding: skip the mask path entirely (trace-time decision).
        m = jnp.max(logits, axis=1, keepdims=True)
        shifted = logits - m
        sumexp = jnp.sum(jnp.exp(shifted), axis=1, keepdims=True)
    else:
        col = jax.lax.broadcasted_iota(jnp.int32, logits.shape, 1)
        valid = col < num_classes
        neg = jnp.finfo(jnp.float32).min
        m = jnp.max(jnp.where(valid, logits, neg), axis=1, keepdims=True)
        shifted = logits - m
        sumexp = jnp.sum(jnp.where(valid, jnp.exp(shifted), 0.0),
                         axis=1, keepdims=True)
    log_sum = jnp.log(sumexp)

    # Padded class columns of scores contain garbage; the wrapper slices [:C].
    scores_ref[...] = shifted - log_sum                       # (TM, Cp) f32
    # Tiny side output so the wrapper can reconstruct logits = scores + lse.
    lse_ref[...] = m + log_sum                                # (TM, 1)  f32


def layering_forward(x, w1, b1, w2, b2, *, block_b=512):
    """x: (B, F) f32; w1: (H, F), b1: (H,), w2: (C, H), b2: (C,) -- PyTorch Linear layout.

    Returns (representation[bf16], logits[f32], scores[f32]) matching the module's
    forward(); logits are reconstructed from scores + logsumexp to avoid a full
    (B, C) f32 HBM writeback stream.
    """
    B, F = x.shape
    H = w1.shape[0]
    C = w2.shape[0]

    # Lane-dense matmul / output dims; batch tile a multiple of 16 (bf16 sublane pack).
    Fp = _round_up(F, 128)
    Hp = _round_up(H, 128)
    Cp = _round_up(C, 128)
    tm = min(_round_up(B, 16), block_b)
    # Prefer >=2 grid steps so the "parallel" batch axis can shard across both
    # TensorCores on v7x (no-op for small batches, harmless on v5e/v6e).
    if B >= 128 and _round_up(B, tm) // tm < 2:
        tm = _round_up((B + 1) // 2, 16)
    Bp = _round_up(B, tm)

    # Wrapper-side layout prep: pre-transpose + zero-pad + bf16 cast of matmul inputs.
    xp = jnp.pad(x, ((0, Bp - B), (0, Fp - F))).astype(jnp.bfloat16)       # (Bp, Fp)
    w1t = jnp.pad(w1.T, ((0, Fp - F), (0, Hp - H))).astype(jnp.bfloat16)   # (Fp, Hp)
    b1p = jnp.pad(b1, (0, Hp - H)).astype(jnp.float32).reshape(1, Hp)      # (1, Hp)
    w2t = jnp.pad(w2.T, ((0, Hp - H), (0, Cp - C))).astype(jnp.bfloat16)   # (Hp, Cp)
    b2p = jnp.pad(b2, (0, Cp - C)).astype(jnp.float32).reshape(1, Cp)      # (1, Cp)

    out_shapes = (
        jax.ShapeDtypeStruct((Bp, Hp), jnp.bfloat16),   # representation (bf16)
        jax.ShapeDtypeStruct((Bp, Cp), jnp.float32),    # log-softmax scores
        jax.ShapeDtypeStruct((Bp, 1), jnp.float32),     # per-row logsumexp
    )

    rep, scores, lse = pl.pallas_call(
        functools.partial(layering_kernel, C),
        out_shape=out_shapes,
        grid=(Bp // tm,),
        in_specs=[
            pl.BlockSpec((tm, Fp), lambda i: (i, 0)),      # x: blocked over batch
            pl.BlockSpec((Fp, Hp), lambda i: (0, 0)),      # w1t: resident in VMEM
            pl.BlockSpec((1, Hp), lambda i: (0, 0)),       # b1
            pl.BlockSpec((Hp, Cp), lambda i: (0, 0)),      # w2t: resident in VMEM
            pl.BlockSpec((1, Cp), lambda i: (0, 0)),       # b2
        ],
        out_specs=(
            pl.BlockSpec((tm, Hp), lambda i: (i, 0)),
            pl.BlockSpec((tm, Cp), lambda i: (i, 0)),
            pl.BlockSpec((tm, 1), lambda i: (i, 0)),
        ),
        compiler_params=pltpu.CompilerParams(
            dimension_semantics=("parallel",),
        ),
    )(xp, w1t, b1p, w2t, b2p)

    # Strip batch / lane padding; reconstruct logits = scores + logsumexp (f32).
    scores_out = scores[:B, :C]
    logits_out = scores_out + lse[:B]
    return rep[:B, :H], logits_out, scores_out


if __name__ == "__main__":
    # Small shapes consistent with the forward pass.
    B, F, H, C = 8, 32, 64, 16

    key = jax.random.PRNGKey(0)
    kx, k1, kb1, k2, kb2 = jax.random.split(key, 5)

    x = jax.random.normal(kx, (B, F), dtype=jnp.float32)
    # Deterministic synthetic parameters (PyTorch Linear convention: (out, in)).
    w1 = jax.random.normal(k1, (H, F), dtype=jnp.float32) * 0.1
    b1 = jax.random.normal(kb1, (H,), dtype=jnp.float32) * 0.1
    w2 = jax.random.normal(k2, (C, H), dtype=jnp.float32) * 0.1
    b2 = jax.random.normal(kb2, (C,), dtype=jnp.float32) * 0.1

    rep, logits, scores = layering_forward(x, w1, b1, w2, b2)
    jax.block_until_ready((rep, logits, scores))

    # Reference with the same bf16-input / f32-accumulate matmul precision.
    x_bf = x.astype(jnp.bfloat16)
    w1t_bf = w1.T.astype(jnp.bfloat16)
    w2t_bf = w2.T.astype(jnp.bfloat16)
    rep_ref = jnp.maximum(
        jnp.dot(x_bf, w1t_bf, preferred_element_type=jnp.float32) + b1, 0.0)
    rep_ref_bf = rep_ref.astype(jnp.bfloat16)
    logits_ref = jnp.dot(rep_ref_bf, w2t_bf,
                         preferred_element_type=jnp.float32) + b2
    scores_ref = jax.nn.log_softmax(logits_ref, axis=1)

    assert jnp.allclose(rep.astype(jnp.float32), rep_ref_bf.astype(jnp.float32),
                        atol=2e-2, rtol=2e-2)
    assert jnp.allclose(logits, logits_ref, atol=2e-2, rtol=2e-2)
    assert jnp.allclose(scores, scores_ref, atol=2e-2, rtol=2e-2)

    # Loose sanity check against a full-f32 reference (catches gross errors).
    rep_f32 = jnp.maximum(x @ w1.T + b1, 0.0)
    logits_f32 = rep_f32 @ w2.T + b2
    scores_f32 = jax.nn.log_softmax(logits_f32, axis=1)
    assert jnp.allclose(rep.astype(jnp.float32), rep_f32, atol=5e-2, rtol=5e-2)
    assert jnp.allclose(scores, scores_f32, atol=5e-2, rtol=5e-2)

    print("KERNEL_OK")
</pallas_src>

<mosaic_0001>
module attributes {stable_mosaic.version = 11 : i64} {
  func.func @layering_kernel(%arg0: i32, %arg1: memref<16x128xbf16, #tpu.memory_space<vmem>>, %arg2: memref<128x128xbf16, #tpu.memory_space<vmem>>, %arg3: memref<1x128xf32, #tpu.memory_space<vmem>>, %arg4: memref<128x128xbf16, #tpu.memory_space<vmem>>, %arg5: memref<1x128xf32, #tpu.memory_space<vmem>>, %arg6: memref<16x128xbf16, #tpu.memory_space<vmem>>, %arg7: memref<16x128xf32, #tpu.memory_space<vmem>>, %arg8: memref<16x1xf32, #tpu.memory_space<vmem>>) attributes {dimension_semantics = [#tpu.dimension_semantics<parallel>], iteration_bounds = array<i64: 1>, scalar_prefetch = 0 : i64, scratch_operands = 0 : i64, tpu.core_type = #tpu.core_type<tc>, window_params = [{transform_indices = @transform_0, window_bounds = array<i64: 16, 128>}, {pipeline_mode = #tpu.pipeline_mode<synchronous>, transform_indices = @transform_1, window_bounds = array<i64: 128, 128>}, {pipeline_mode = #tpu.pipeline_mode<synchronous>, transform_indices = @transform_2, window_bounds = array<i64: 1, 128>}, {pipeline_mode = #tpu.pipeline_mode<synchronous>, transform_indices = @transform_3, window_bounds = array<i64: 128, 128>}, {pipeline_mode = #tpu.pipeline_mode<synchronous>, transform_indices = @transform_4, window_bounds = array<i64: 1, 128>}, {transform_indices = @transform_5, window_bounds = array<i64: 16, 128>}, {transform_indices = @transform_6, window_bounds = array<i64: 16, 128>}, {transform_indices = @transform_7, window_bounds = array<i64: 16, 1>}]} {
    %c0 = arith.constant 0 : index
    %c0_0 = arith.constant 0 : index
    %0 = vector.load %arg1[%c0, %c0_0] : memref<16x128xbf16, #tpu.memory_space<vmem>>, vector<16x128xbf16>
    %c0_1 = arith.constant 0 : index
    %c0_2 = arith.constant 0 : index
    %1 = vector.load %arg2[%c0_1, %c0_2] : memref<128x128xbf16, #tpu.memory_space<vmem>>, vector<128x128xbf16>
    %cst = arith.constant dense<0.000000e+00> : vector<16x128xf32>
    %2 = tpu.matmul %0, %1, %cst {dimension_numbers = #tpu.dot_dimension_numbers<[1], [0], [0], [1], [0, 0, 1, 1], [], []>} : vector<16x128xbf16>, vector<128x128xbf16>, vector<16x128xf32> -> vector<16x128xf32>
    %c0_3 = arith.constant 0 : index
    %c0_4 = arith.constant 0 : index
    %3 = vector.load %arg3[%c0_3, %c0_4] : memref<1x128xf32, #tpu.memory_space<vmem>>, vector<1x128xf32>
    %4 = vector.broadcast %3 : vector<1x128xf32> to vector<16x128xf32>
    %5 = arith.addf %2, %4 : vector<16x128xf32>
    %cst_5 = arith.constant 0.000000e+00 : f32
    %6 = vector.broadcast %cst_5 : f32 to vector<16x128xf32>
    %7 = arith.maximumf %5, %6 : vector<16x128xf32>
    %8 = arith.truncf %7 : vector<16x128xf32> to vector<16x128xbf16>
    %c0_6 = arith.constant 0 : index
    %c0_7 = arith.constant 0 : index
    %9 = vector.load %arg6[%c0_6, %c0_7] : memref<16x128xbf16, #tpu.memory_space<vmem>>, vector<16x128xbf16>
    tpu.vector_store %arg6[%c0_6, %c0_7], %8 {strides = array<i32>} : memref<16x128xbf16, #tpu.memory_space<vmem>>, vector<16x128xbf16>,
    %c0_8 = arith.constant 0 : index
    %c0_9 = arith.constant 0 : index
    %10 = vector.load %arg4[%c0_8, %c0_9] : memref<128x128xbf16, #tpu.memory_space<vmem>>, vector<128x128xbf16>
    %cst_10 = arith.constant dense<0.000000e+00> : vector<16x128xf32>
    %11 = tpu.matmul %8, %10, %cst_10 {dimension_numbers = #tpu.dot_dimension_numbers<[1], [0], [0], [1], [0, 0, 1, 1], [], []>} : vector<16x128xbf16>, vector<128x128xbf16>, vector<16x128xf32> -> vector<16x128xf32>
    %c0_11 = arith.constant 0 : index
    %c0_12 = arith.constant 0 : index
    %12 = vector.load %arg5[%c0_11, %c0_12] : memref<1x128xf32, #tpu.memory_space<vmem>>, vector<1x128xf32>
    %13 = vector.broadcast %12 : vector<1x128xf32> to vector<16x128xf32>
    %14 = arith.addf %11, %13 : vector<16x128xf32>
    %15 = tpu.iota {dimensions = array<i32: 1>} : vector<16x128xi32>
    %c16_i32 = arith.constant 16 : i32
    %16 = vector.broadcast %c16_i32 : i32 to vector<16x128xi32>
    %17 = arith.cmpi slt, %15, %16 : vector<16x128xi32>
    %cst_13 = arith.constant -3.40282347E+38 : f32
    %18 = vector.broadcast %cst_13 : f32 to vector<16x128xf32>
    %19 = arith.select %17, %14, %18 : vector<16x128xi1>, vector<16x128xf32>
    %cst_14 = arith.constant dense<0xFF800000> : vector<16xf32>
    %20 = vector.multi_reduction <maximumf>, %19, %cst_14 [1] : vector<16x128xf32> to vector<16xf32>
    %21 = vector.shape_cast %20 : vector<16xf32> to vector<16x1xf32>
    %22 = vector.broadcast %21 : vector<16x1xf32> to vector<16x128xf32>
    %23 = arith.subf %14, %22 : vector<16x128xf32>
    %24 = math.exp %23 : vector<16x128xf32>
    %cst_15 = arith.constant 0.000000e+00 : f32
    %25 = vector.broadcast %cst_15 : f32 to vector<16x128xf32>
    %26 = arith.select %17, %24, %25 : vector<16x128xi1>, vector<16x128xf32>
    %cst_16 = arith.constant dense<0.000000e+00> : vector<16xf32>
    %27 = vector.multi_reduction <add>, %26, %cst_16 [1] : vector<16x128xf32> to vector<16xf32>
    %28 = vector.shape_cast %27 : vector<16xf32> to vector<16x1xf32>
    %29 = math.log %28 : vector<16x1xf32>
    %30 = vector.broadcast %29 : vector<16x1xf32> to vector<16x128xf32>
    %31 = arith.subf %23, %30 : vector<16x128xf32>
    %c0_17 = arith.constant 0 : index
    %c0_18 = arith.constant 0 : index
    %32 = vector.load %arg7[%c0_17, %c0_18] : memref<16x128xf32, #tpu.memory_space<vmem>>, vector<16x128xf32>
    tpu.vector_store %arg7[%c0_17, %c0_18], %31 {strides = array<i32>} : memref<16x128xf32, #tpu.memory_space<vmem>>, vector<16x128xf32>,
    %33 = arith.addf %21, %29 : vector<16x1xf32>
    %c0_19 = arith.constant 0 : index
    %c0_20 = arith.constant 0 : index
    %34 = vector.load %arg8[%c0_19, %c0_20] : memref<16x1xf32, #tpu.memory_space<vmem>>, vector<16x1xf32>
    tpu.vector_store %arg8[%c0_19, %c0_20], %33 {strides = array<i32>} : memref<16x1xf32, #tpu.memory_space<vmem>>, vector<16x1xf32>,
    return
  }
  func.func @transform_0(%arg0: i32) -> (i32, i32) {
    %c0_i32 = arith.constant 0 : i32
    %c0_i32_0 = arith.constant 0 : i32
    return %arg0, %c0_i32 : i32, i32
  }
  func.func @transform_1(%arg0: i32) -> (i32, i32) {
    %c0_i32 = arith.constant 0 : i32
    %c0_i32_0 = arith.constant 0 : i32
    %c0_i32_1 = arith.constant 0 : i32
    return %c0_i32, %c0_i32_0 : i32, i32
  }
  func.func @transform_2(%arg0: i32) -> (i32, i32) {
    %c0_i32 = arith.constant 0 : i32
    %c0_i32_0 = arith.constant 0 : i32
    %c0_i32_1 = arith.constant 0 : i32
    return %c0_i32, %c0_i32_0 : i32, i32
  }
  func.func @transform_3(%arg0: i32) -> (i32, i32) {
    %c0_i32 = arith.constant 0 : i32
    %c0_i32_0 = arith.constant 0 : i32
    %c0_i32_1 = arith.constant 0 : i32
    return %c0_i32, %c0_i32_0 : i32, i32
  }
  func.func @transform_4(%arg0: i32) -> (i32, i32) {
    %c0_i32 = arith.constant 0 : i32
    %c0_i32_0 = arith.constant 0 : i32
    %c0_i32_1 = arith.constant 0 : i32
    return %c0_i32, %c0_i32_0 : i32, i32
  }
  func.func @transform_5(%arg0: i32) -> (i32, i32) {
    %c0_i32 = arith.constant 0 : i32
    %c0_i32_0 = arith.constant 0 : i32
    return %arg0, %c0_i32 : i32, i32
  }
  func.func @transform_6(%arg0: i32) -> (i32, i32) {
    %c0_i32 = arith.constant 0 : i32
    %c0_i32_0 = arith.constant 0 : i32
    return %arg0, %c0_i32 : i32, i32
  }
  func.func @transform_7(%arg0: i32) -> (i32, i32) {
    %c0_i32 = arith.constant 0 : i32
    %c0_i32_0 = arith.constant 0 : i32
    return %arg0, %c0_i32 : i32, i32
  }
}

</mosaic_0001>

<llo_original>
// kernel: tpu_custom_call.1
$region0: #{tpu_custom_call.1}
  #allocation0 [shape = 'u32[]', space=smem, size = 0x4, offset = 0x4, fixed_abs, tag = 'smem constant byte address 0x4 - core index']
  #allocation1 [shape = 'u32[72,128]{1,0:T(1,128)}', space=vmem, size = 0x9000, scoped, tag = 'internal scratch']
  %s0 = inlined_call_operand.hbm [shape: bf16[16,128], index: 0, kind: input, shape index: {}]
  %s1 = inlined_call_operand.hbm [shape: bf16[128,128], index: 1, kind: input, shape index: {}]
  %s2 = inlined_call_operand.vmem [shape: f32[1,128], index: 2, kind: input, shape index: {}]
  %s3 = inlined_call_operand.hbm [shape: bf16[128,128], index: 3, kind: input, shape index: {}]
  %s4 = inlined_call_operand.vmem [shape: f32[1,128], index: 4, kind: input, shape index: {}]
  %s5 = inlined_call_operand.hbm [shape: bf16[16,128], index: 5, kind: output, shape index: {0}]
  %s6 = inlined_call_operand.hbm [shape: f32[16,128], index: 6, kind: output, shape index: {1}]
  %s7 = inlined_call_operand.vmem [shape: f32[16,1], index: 7, kind: output, shape index: {2}]
  %8 = xla_tuple %s5, %s6, %s7
  %s9 = sld [smem:[#allocation0]]
  $region58: #{tpu_custom_call.1} parent=0
    _
  %s11 = ssub.s32 1, %s9
  %s12 = scalar_select 0, %s11, %s9
  $region1: #{tpu_custom_call.1} parent=0
    #allocation2 [shape = 'u8[4096]{0}', space=vmem, size = 0x1000, scoped, tag = 'input window, operand 0, single buffered']
    #allocation3 [shape = 's32[1]{0}', space=sflag, size = 0x4, scoped, tag = 'scoped memory for tpu_custom_call.1']
    #allocation4 [shape = 's32[1]{0}', space=sflag, size = 0x4, scoped, tag = 'scoped memory for tpu_custom_call.1']
    #allocation5 [shape = 'u8[32768]{0}', space=vmem, size = 0x8000, scoped, tag = 'input window, operand 1, single buffered']
    #allocation6 [shape = 's32[1]{0}', space=sflag, size = 0x4, scoped, tag = 'scoped memory for tpu_custom_call.1']
    #allocation7 [shape = 'u8[32768]{0}', space=vmem, size = 0x8000, scoped, tag = 'input window, operand 3, single buffered']
    #allocation8 [shape = 'u8[4096]{0}', space=vmem, size = 0x1000, scoped, tag = 'output window, operand 0, single buffered']
    #allocation9 [shape = 'u8[8192]{0}', space=vmem, size = 0x2000, scoped, tag = 'output window, operand 1, single buffered']
    #allocation10 [shape = 's32[1]{0}', space=sflag, size = 0x4, scoped, tag = 'scoped memory for tpu_custom_call.1']
    %13 = vsyncpa [#allocation3], 0
    %14 = vsyncpa [#allocation6], 0
    %15 = vsyncpa [#allocation4], 0
    %16 = vsyncpa [#allocation10], 0
    // Predicated region
    $region2: #{tpu_custom_call.1} parent=1 // pred_check
      _
    $region3: #{tpu_custom_call.1} parent=1 // pred_check_branch
      %18 = sbr.rel (0) target = $region5
    $region4: #{tpu_custom_call.1} parent=1 // pred_region
      %20 = vsyncadd [#allocation3], 0
      %s21 = sshll.u32 %s0, 4
      %s22 = int_to_ptr.hbm [resolvable:$true] %s21
      %s23 = sshll.u32 [#allocation2], 4
      %s24 = int_to_ptr.vmem [resolvable:$true] %s23
      %29 = dma.hbm_to_vmem [thread:$0]  %s22, 128, %s24, [#allocation3], 64, 64, 4
    $region5: #{tpu_custom_call.1} parent=1 // pred_fallthru
      _
    // Predicated region
    $region6: #{tpu_custom_call.1} parent=1 // pred_check
      _
    $region7: #{tpu_custom_call.1} parent=1 // pred_check_branch
      %31 = sbr.rel (0) target = $region9
    $region8: #{tpu_custom_call.1} parent=1 // pred_region
      %33 = vsyncadd [#allocation6], 0
      %s34 = sshll.u32 %s1, 4
      %s35 = int_to_ptr.hbm [resolvable:$true] %s34
      %s36 = sshll.u32 [#allocation5], 4
      %s37 = int_to_ptr.vmem [resolvable:$true] %s36
      %42 = dma.hbm_to_vmem [thread:$0]  %s35, 1024, %s37, [#allocation6], 64, 64, 4
    $region9: #{tpu_custom_call.1} parent=1 // pred_fallthru
      _
    // Predicated region
    $region10: #{tpu_custom_call.1} parent=1 // pred_check
      _
    $region11: #{tpu_custom_call.1} parent=1 // pred_check_branch
      %44 = sbr.rel (0) target = $region13
    $region12: #{tpu_custom_call.1} parent=1 // pred_region
      _
    $region13: #{tpu_custom_call.1} parent=1 // pred_fallthru
      _
    // Predicated region
    $region14: #{tpu_custom_call.1} parent=1 // pred_check
      _
    $region15: #{tpu_custom_call.1} parent=1 // pred_check_branch
      %46 = sbr.rel (0) target = $region17
    $region16: #{tpu_custom_call.1} parent=1 // pred_region
      %48 = vsyncadd [#allocation6], 0
      %s49 = sshll.u32 %s3, 4
      %s50 = int_to_ptr.hbm [resolvable:$true] %s49
      %s51 = sshll.u32 [#allocation7], 4
      %s52 = int_to_ptr.vmem [resolvable:$true] %s51
      %57 = dma.hbm_to_vmem [thread:$0]  %s50, 1024, %s52, [#allocation6], 64, 64, 4
    $region17: #{tpu_custom_call.1} parent=1 // pred_fallthru
      _
    // Predicated region
    $region18: #{tpu_custom_call.1} parent=1 // pred_check
      _
    $region19: #{tpu_custom_call.1} parent=1 // pred_check_branch
      %59 = sbr.rel (0) target = $region21
    $region20: #{tpu_custom_call.1} parent=1 // pred_region
      _
    $region21: #{tpu_custom_call.1} parent=1 // pred_fallthru
      _
    // Predicated region
    $region22: #{tpu_custom_call.1} parent=1 // pred_check
      _
    $region23: #{tpu_custom_call.1} parent=1 // pred_check_branch
      %61 = sbr.rel (0) target = $region25
    $region24: #{tpu_custom_call.1} parent=1 // pred_region
      %63 = dma.done [#allocation3], 128
    $region25: #{tpu_custom_call.1} parent=1 // pred_fallthru
      _
    // Predicated region
    $region26: #{tpu_custom_call.1} parent=1 // pred_check
      _
    $region27: #{tpu_custom_call.1} parent=1 // pred_check_branch
      %65 = sbr.rel (0) target = $region29
    $region28: #{tpu_custom_call.1} parent=1 // pred_region
      %67 = dma.done [#allocation6], 1024
    $region29: #{tpu_custom_call.1} parent=1 // pred_fallthru
      _
    // Predicated region
    $region30: #{tpu_custom_call.1} parent=1 // pred_check
      _
    $region31: #{tpu_custom_call.1} parent=1 // pred_check_branch
      %69 = sbr.rel (0) target = $region33
    $region32: #{tpu_custom_call.1} parent=1 // pred_region
      %71 = dma.done [#allocation6], 1024
    $region33: #{tpu_custom_call.1} parent=1 // pred_fallthru
      _
    %v72 = vld [vmem:[#allocation2] sm:$0xf]
    %v73 = vld [vmem:[#allocation2 + $0x4] sm:$0xf]
    %v74 = vld [vmem:[#allocation5] sm:$0xf]
    %v75 = vld [vmem:[#allocation5 + $0x4] sm:$0xf]
    %v76 = vld [vmem:[#allocation5 + $0x8] sm:$0xf]
    %v77 = vld [vmem:[#allocation5 + $0xc] sm:$0xf]
    %v78 = vld [vmem:[#allocation5 + $0x10] sm:$0xf]
    %v79 = vld [vmem:[#allocation5 + $0x14] sm:$0xf]
    %v80 = vld [vmem:[#allocation5 + $0x18] sm:$0xf]
    %v81 = vld [vmem:[#allocation5 + $0x1c] sm:$0xf]
    %v82 = vld [vmem:[#allocation5 + $0x20] sm:$0xf]
    %v83 = vld [vmem:[#allocation5 + $0x24] sm:$0xf]
    %v84 = vld [vmem:[#allocation5 + $0x28] sm:$0xf]
    %v85 = vld [vmem:[#allocation5 + $0x2c] sm:$0xf]
    %v86 = vld [vmem:[#allocation5 + $0x30] sm:$0xf]
    %v87 = vld [vmem:[#allocation5 + $0x34] sm:$0xf]
    %v88 = vld [vmem:[#allocation5 + $0x38] sm:$0xf]
    %v89 = vld [vmem:[#allocation5 + $0x3c] sm:$0xf]
    %v90 = vld [vmem:[%s2] sm:$0x1]
    %v92 = vperm.slane %v90, 0
    %v96 = vunpack.c.l.b16 %v72
    %v97 = vunpack.c.l.b16 %v73
    %v98 = vpack.c.b16 %v97, %v96
    %v116 = vunpack.c.l.b16 %v74
    %v117 = vunpack.c.l.b16 %v75
    %v118 = vunpack.c.l.b16 %v76
    %v119 = vunpack.c.l.b16 %v77
    %v120 = vunpack.c.l.b16 %v78
    %v121 = vunpack.c.l.b16 %v79
    %v122 = vunpack.c.l.b16 %v80
    %v123 = vunpack.c.l.b16 %v81
    %v124 = vunpack.c.l.b16 %v82
    %v125 = vunpack.c.l.b16 %v83
    %v126 = vunpack.c.l.b16 %v84
    %v127 = vunpack.c.l.b16 %v85
    %v128 = vunpack.c.l.b16 %v86
    %v129 = vunpack.c.l.b16 %v87
    %v130 = vunpack.c.l.b16 %v88
    %v131 = vunpack.c.l.b16 %v89
    %v132 = vpack.c.b16 %v117, %v116
    %v133 = vpack.c.b16 %v119, %v118
    %v134 = vpack.c.b16 %v121, %v120
    %v135 = vpack.c.b16 %v123, %v122
    %v136 = vpack.c.b16 %v125, %v124
    %v137 = vpack.c.b16 %v127, %v126
    %v138 = vpack.c.b16 %v129, %v128
    %v139 = vpack.c.b16 %v131, %v130
    %148 = vmatpush.bf16.msra.mxu0 %v139
    %149 = vmatpush.bf16.msra.mxu0 %v138
    %150 = vmatpush.bf16.msra.mxu0 %v137
    %151 = vmatpush.bf16.msra.mxu0 %v136
    %152 = vmatpush.bf16.msra.mxu0 %v135
    %153 = vmatpush.bf16.msra.mxu0 %v134
    %154 = vmatpush.bf16.msra.mxu0 %v133
    %155 = vmatpush.bf16.msra.mxu0 %v132
    %156 = vmatmul.bf16.gmra.mxu0 %v98
    %v157 = vpop.f32.mrf.mxu0
    %v158 = vadd.f32 %v92, %v157
    %v159 = vpop.f32.mrf.mxu0
    %v160 = vadd.f32 %v92, %v159
    %161 = vdwg.mxu0
    %v162 = vmax.f32 %v158, 0.0
    %v163 = vmax.f32 %v160, 0.0
    %v164 = vpack.c.bf16 %v162, %v162
    %v165 = vpack.c.bf16 %v163, %v163
    %166 = vst [vmem:[#allocation8] sm:$0xf] %v164
    %167 = vst [vmem:[#allocation8 + $0x4] sm:$0xf] %v165
    %v168 = vld [vmem:[#allocation7] sm:$0xf]
    %v169 = vld [vmem:[#allocation7 + $0x4] sm:$0xf]
    %v170 = vld [vmem:[#allocation7 + $0x8] sm:$0xf]
    %v171 = vld [vmem:[#allocation7 + $0xc] sm:$0xf]
    %v172 = vld [vmem:[#allocation7 + $0x10] sm:$0xf]
    %v173 = vld [vmem:[#allocation7 + $0x14] sm:$0xf]
    %v174 = vld [vmem:[#allocation7 + $0x18] sm:$0xf]
    %v175 = vld [vmem:[#allocation7 + $0x1c] sm:$0xf]
    %v176 = vld [vmem:[#allocation7 + $0x20] sm:$0xf]
    %v177 = vld [vmem:[#allocation7 + $0x24] sm:$0xf]
    %v178 = vld [vmem:[#allocation7 + $0x28] sm:$0xf]
    %v179 = vld [vmem:[#allocation7 + $0x2c] sm:$0xf]
    %v180 = vld [vmem:[#allocation7 + $0x30] sm:$0xf]
    %v181 = vld [vmem:[#allocation7 + $0x34] sm:$0xf]
    %v182 = vld [vmem:[#allocation7 + $0x38] sm:$0xf]
    %v183 = vld [vmem:[#allocation7 + $0x3c] sm:$0xf]
    %v184 = vld [vmem:[%s4] sm:$0x1]
    %v186 = vperm.slane %v184, 0
    %v190 = vunpack.c.l.b16 %v164
    %v191 = vunpack.c.l.b16 %v165
    %v192 = vpack.c.b16 %v191, %v190
    %v210 = vunpack.c.l.b16 %v168
    %v211 = vunpack.c.l.b16 %v169
    %v212 = vunpack.c.l.b16 %v170
    %v213 = vunpack.c.l.b16 %v171
    %v214 = vunpack.c.l.b16 %v172
    %v215 = vunpack.c.l.b16 %v173
    %v216 = vunpack.c.l.b16 %v174
    %v217 = vunpack.c.l.b16 %v175
    %v218 = vunpack.c.l.b16 %v176
    %v219 = vunpack.c.l.b16 %v177
    %v220 = vunpack.c.l.b16 %v178
    %v221 = vunpack.c.l.b16 %v179
    %v222 = vunpack.c.l.b16 %v180
    %v223 = vunpack.c.l.b16 %v181
    %v224 = vunpack.c.l.b16 %v182
    %v225 = vunpack.c.l.b16 %v183
    %v226 = vpack.c.b16 %v211, %v210
    %v227 = vpack.c.b16 %v213, %v212
    %v228 = vpack.c.b16 %v215, %v214
    %v229 = vpack.c.b16 %v217, %v216
    %v230 = vpack.c.b16 %v219, %v218
    %v231 = vpack.c.b16 %v221, %v220
    %v232 = vpack.c.b16 %v223, %v222
    %v233 = vpack.c.b16 %v225, %v224
    %242 = vmatpush.bf16.msra.mxu0 %v233
    %243 = vmatpush.bf16.msra.mxu0 %v232
    %244 = vmatpush.bf16.msra.mxu0 %v231
    %245 = vmatpush.bf16.msra.mxu0 %v230
    %246 = vmatpush.bf16.msra.mxu0 %v229
    %247 = vmatpush.bf16.msra.mxu0 %v228
    %248 = vmatpush.bf16.msra.mxu0 %v227
    %249 = vmatpush.bf16.msra.mxu0 %v226
    %250 = vmatmul.bf16.gmra.mxu0 %v192
    %v251 = vpop.f32.mrf.mxu0
    %v252 = vadd.f32 %v186, %v251
    %v253 = vpop.f32.mrf.mxu0
    %v254 = vadd.f32 %v186, %v253
    %255 = vdwg.mxu0
    %v256 = vlaneseq
    %v257 = vand.u32 %v256, 127
    %vm258 = vcmp.lt.s32.totalorder %v257, 16
    %v259 = vsel %vm258, %v252, -3.4028235e+38
    %v260 = vsel %vm258, %v254, -3.4028235e+38
    %261 = vmax.xlane.f32.xlu0 %v259
    %v262 = vpop.xlane.xlu0 %261
    %263 = vmax.xlane.f32.xlu0 %v260
    %v264 = vpop.xlane.xlu0 %263
    %v265 = vsub.f32 %v252, %v262
    %v266 = vsub.f32 %v254, %v264
    %v267 = vmul.f32 %v265, 1.442695
    %v268 = vpow.pop %v267
    %v269 = vmul.f32 %v266, 1.442695
    %v270 = vpow.pop %v269
    %v271 = vsel %vm258, %v268, 0.0
    %v272 = vsel %vm258, %v270, 0.0
    %273 = vadd.xlane.f32.xlu0 %v271
    %v274 = vpop.xlane.xlu0 %273
    %275 = vadd.xlane.f32.xlu0 %v272
    %v276 = vpop.xlane.xlu0 %275
    %v277 = vlog2.pop %v274
    %v278 = vmul.f32 %v277, 0.6931472
    %v279 = vlog2.pop %v276
    %v280 = vmul.f32 %v279, 0.6931472
    %v281 = vsub.f32 %v265, %v278
    %v282 = vsub.f32 %v266, %v280
    %283 = vst [vmem:[#allocation9] sm:$0xff] %v281
    %284 = vst [vmem:[#allocation9 + $0x8] sm:$0xff] %v282
    %v285 = vadd.f32 %v262, %v278
    %v286 = vadd.f32 %v264, %v280
    %vm287 = vcmask 7168
    %288 = vst.msk [vmem:[%s7] sm:$0xff] %vm287, %v285
    %289 = vst.msk [vmem:[%s7 + $0x8] sm:$0xff] %vm287, %v286
    // Predicated region
    $region34: #{tpu_custom_call.1} parent=1 // pred_check
      _
    $region35: #{tpu_custom_call.1} parent=1 // pred_check_branch
      %291 = sbr.rel (0) target = $region37
    $region36: #{tpu_custom_call.1} parent=1 // pred_region
      %293 = vsyncadd [#allocation4], 0
      %s294 = sshll.u32 [#allocation8], 4
      %s295 = int_to_ptr.vmem [resolvable:$true] %s294
      %s296 = sshll.u32 %s5, 4
      %s297 = int_to_ptr.hbm [resolvable:$true] %s296
      %302 = dma.vmem_to_hbm [thread:$0]  %s295, 128, %s297, [#allocation4], 64, 64, 4
    $region37: #{tpu_custom_call.1} parent=1 // pred_fallthru
      _
    // Predicated region
    $region38: #{tpu_custom_call.1} parent=1 // pred_check
      _
    $region39: #{tpu_custom_call.1} parent=1 // pred_check_branch
      %304 = sbr.rel (0) target = $region41
    $region40: #{tpu_custom_call.1} parent=1 // pred_region
      %306 = vsyncadd [#allocation10], 0
      %s307 = sshll.u32 [#allocation9], 4
      %s308 = int_to_ptr.vmem [resolvable:$true] %s307
      %s309 = sshll.u32 %s6, 4
      %s310 = int_to_ptr.hbm [resolvable:$true] %s309
      %315 = dma.vmem_to_hbm [thread:$0]  %s308, 256, %s310, [#allocation10], 128, 128, 8
    $region41: #{tpu_custom_call.1} parent=1 // pred_fallthru
      _
    // Predicated region
    $region42: #{tpu_custom_call.1} parent=1 // pred_check
      _
    $region43: #{tpu_custom_call.1} parent=1 // pred_check_branch
      %317 = sbr.rel (0) target = $region45
    $region44: #{tpu_custom_call.1} parent=1 // pred_region
      _
    $region45: #{tpu_custom_call.1} parent=1 // pred_fallthru
      _
    // Predicated region
    $region46: #{tpu_custom_call.1} parent=1 // pred_check
      _
    $region47: #{tpu_custom_call.1} parent=1 // pred_check_branch
      %319 = sbr.rel (0) target = $region49
    $region48: #{tpu_custom_call.1} parent=1 // pred_region
      %321 = dma.done [#allocation4], 128
    $region49: #{tpu_custom_call.1} parent=1 // pred_fallthru
      _
    // Predicated region
    $region50: #{tpu_custom_call.1} parent=1 // pred_check
      _
    $region51: #{tpu_custom_call.1} parent=1 // pred_check_branch
      %323 = sbr.rel (0) target = $region53
    $region52: #{tpu_custom_call.1} parent=1 // pred_region
      %325 = dma.done [#allocation10], 256
    $region53: #{tpu_custom_call.1} parent=1 // pred_fallthru
      _
    // Predicated region
    $region54: #{tpu_custom_call.1} parent=1 // pred_check
      _
    $region55: #{tpu_custom_call.1} parent=1 // pred_check_branch
      %327 = sbr.rel (0) target = $region57
    $region56: #{tpu_custom_call.1} parent=1 // pred_region
      _
    $region57: #{tpu_custom_call.1} parent=1 // pred_fallthru
      _
    %328 = vsyncpa [#allocation3], 1
    %329 = vsyncpa [#allocation6], 1
    %330 = vsyncpa [#allocation4], 1
    %331 = vsyncpa [#allocation10], 1

</llo_original>
